<compile_context>
chip_gen: v6e
topology: v6e:2x2x1
jax: 0.10.0
libtpu: 0.0.40
codegen_flags: <defaults>
</compile_context>

<pallas_src>
import functools

import jax
import jax.numpy as jnp
from jax.experimental import pallas as pl
from jax.experimental.pallas import tpu as pltpu


def _round_up(n: int, m: int) -> int:
    return (n + m - 1) // m * m


def _ff_kernel(x_ref, w1_ref, b1_ref, w2_ref, b2_ref, labels_ref,
               pred_ref, loss_ref, *, n_valid):
    # x:      (B_pad, F_pad)  f32 or bf16
    # w1:     (F_pad, H_pad)  f32 or bf16      b1: (1, H_pad) f32
    # w2:     (1, H_pad)      f32  (fc2 weight as a lane-dense row)
    # b2:     (1, 1)          f32  in SMEM
    # labels: (B_pad, 1)      f32
    # pred:   (B_pad, 128)    f32  lane-dense slab (column 0 holds the answer)
    # loss:   (1, 1)          f32  sum of squared errors over the real rows
    x = x_ref[...]

    # fc1 + ReLU: one full-lane MXU matmul with f32 accumulation, VPU bias/ReLU.
    h = jnp.dot(x, w1_ref[...], preferred_element_type=jnp.float32)
    h = jnp.maximum(h + b1_ref[...], 0.0)                         # (B_pad, H_pad) f32

    # fc2 (out_features == 1): VPU multiply + XLU lane reduction instead of an
    # N=1 MXU matmul.
    b2 = b2_ref[0, 0]
    pred_col = jnp.sum(h * w2_ref[...], axis=-1, keepdims=True) + b2   # (B_pad, 1)

    # Lane-dense prediction store (unmasked vst into the output tile).
    pred_ref[...] = jnp.broadcast_to(pred_col, pred_ref.shape).astype(pred_ref.dtype)

    # MSE partial: sum of squared errors over the real (non-padded) rows only.
    row = jax.lax.broadcasted_iota(jnp.int32, pred_col.shape, 0)
    diff = jnp.where(row < n_valid, pred_col - labels_ref[...], 0.0)
    loss_ref[...] = jnp.sum(diff * diff, axis=0, keepdims=True)        # (1, 1)


@functools.partial(jax.jit, static_argnames=("use_bf16_matmul",))
def feed_forward_model(inputs, labels, w1, b1, w2, b2, *, use_bf16_matmul=False):
    """Pallas equivalent of FeedForwardModel.forward(inputs, labels).

    inputs: (B, sequence_length, input_size) float32
    labels: (B,) float32
    w1: (F, 50), b1: (50,), w2: (50, 1), b2: (1,)   (weights stored as (in, out))
    Returns {'prediction': (B, 1) f32, 'loss': () f32}.
    """
    B = inputs.shape[0]
    x = inputs.reshape(B, -1).astype(jnp.float32)        # torch.flatten(start_dim=1)
    F = x.shape[1]
    H = w1.shape[1]

    F_pad = _round_up(F, 128)
    H_pad = _round_up(H, 128)
    B_pad = _round_up(B, 8)

    # One-time zero padding to TPU-friendly (sublane, lane) multiples.
    x_p = jnp.zeros((B_pad, F_pad), jnp.float32).at[:B, :F].set(x)
    w1_p = jnp.zeros((F_pad, H_pad), jnp.float32).at[:F, :H].set(w1.astype(jnp.float32))
    b1_p = jnp.zeros((1, H_pad), jnp.float32).at[0, :H].set(b1.astype(jnp.float32))
    w2_row = jnp.zeros((1, H_pad), jnp.float32).at[0, :H].set(
        w2.astype(jnp.float32)[:, 0])
    b2_s = b2.reshape(1, 1).astype(jnp.float32)
    labels_p = jnp.zeros((B_pad, 1), jnp.float32).at[:B, 0].set(
        labels.astype(jnp.float32))

    if use_bf16_matmul:
        # v6e/v7x: bf16 MXU operands, f32 accumulate; elementwise stays f32.
        x_p = x_p.astype(jnp.bfloat16)
        w1_p = w1_p.astype(jnp.bfloat16)

    vmem = pl.BlockSpec(memory_space=pltpu.MemorySpace.VMEM)
    smem = pl.BlockSpec(memory_space=pltpu.MemorySpace.SMEM)

    pred_slab, loss_sum = pl.pallas_call(
        functools.partial(_ff_kernel, n_valid=B),
        out_shape=(
            jax.ShapeDtypeStruct((B_pad, 128), jnp.float32),   # lane-dense prediction
            jax.ShapeDtypeStruct((1, 1), jnp.float32),         # sum of squared errors
        ),
        in_specs=[vmem, vmem, vmem, vmem, smem, vmem],
        out_specs=(vmem, vmem),
    )(x_p, w1_p, b1_p, w2_row, b2_s, labels_p)

    prediction = pred_slab[:B, :1]            # (B, 1), matches torch fc2 output
    loss = loss_sum[0, 0] / B                 # finish the mean outside the kernel
    return {"prediction": prediction, "loss": loss}


def init_params(key, sequence_length, input_size, hidden=50):
    """Deterministic parameter init (shapes match the PyTorch module)."""
    in_features = sequence_length * input_size
    k1, k2, k3, k4 = jax.random.split(key, 4)
    # Uniform(-1/sqrt(fan_in), 1/sqrt(fan_in)) like torch.nn.Linear default.
    bound1 = 1.0 / jnp.sqrt(in_features)
    bound2 = 1.0 / jnp.sqrt(hidden)
    w1 = jax.random.uniform(k1, (in_features, hidden), jnp.float32, -bound1, bound1)
    b1 = jax.random.uniform(k2, (hidden,), jnp.float32, -bound1, bound1)
    w2 = jax.random.uniform(k3, (hidden, 1), jnp.float32, -bound2, bound2)
    b2 = jax.random.uniform(k4, (1,), jnp.float32, -bound2, bound2)
    return w1, b1, w2, b2


if __name__ == "__main__":
    sequence_length = 8
    input_size = 4
    batch = 8

    key = jax.random.PRNGKey(0)
    k_x, k_y, k_p = jax.random.split(key, 3)

    inputs = jax.random.normal(k_x, (batch, sequence_length, input_size), jnp.float32)
    labels = jax.random.normal(k_y, (batch,), jnp.float32)
    w1, b1, w2, b2 = init_params(k_p, sequence_length, input_size)

    # --- f32 path: exact check vs. plain-JAX reference ---------------------
    out = feed_forward_model(inputs, labels, w1, b1, w2, b2)
    jax.block_until_ready(out)

    x_flat = inputs.reshape(batch, -1)
    h_ref = jnp.maximum(x_flat @ w1 + b1, 0.0)
    pred_ref = h_ref @ w2 + b2
    loss_ref = jnp.mean((pred_ref[:, 0] - labels) ** 2)

    assert out["prediction"].shape == (batch, 1)
    assert jnp.allclose(out["prediction"], pred_ref, atol=1e-5, rtol=1e-5)
    assert jnp.allclose(out["loss"], loss_ref, atol=1e-5, rtol=1e-5)

    # --- bf16-matmul path (v6e/v7x bandwidth option), checked vs. bf16 ref --
    out_bf = feed_forward_model(inputs, labels, w1, b1, w2, b2,
                                use_bf16_matmul=True)
    jax.block_until_ready(out_bf)

    h_bf = jnp.maximum(
        jnp.dot(x_flat.astype(jnp.bfloat16), w1.astype(jnp.bfloat16),
                preferred_element_type=jnp.float32) + b1, 0.0)
    pred_bf = h_bf @ w2 + b2
    loss_bf = jnp.mean((pred_bf[:, 0] - labels) ** 2)

    assert jnp.allclose(out_bf["prediction"], pred_bf, atol=1e-3, rtol=1e-3)
    assert jnp.allclose(out_bf["loss"], loss_bf, atol=1e-3, rtol=1e-3)

    print("KERNEL_OK")
</pallas_src>

<mosaic_0001>
module attributes {stable_mosaic.version = 11 : i64} {
  func.func @_ff_kernel(%arg0: memref<8x128xf32, #tpu.memory_space<vmem>>, %arg1: memref<128x128xf32, #tpu.memory_space<vmem>>, %arg2: memref<1x128xf32, #tpu.memory_space<vmem>>, %arg3: memref<1x128xf32, #tpu.memory_space<vmem>>, %arg4: memref<1x1xf32, #tpu.memory_space<smem>>, %arg5: memref<8x1xf32, #tpu.memory_space<vmem>>, %arg6: memref<8x128xf32, #tpu.memory_space<vmem>>, %arg7: memref<1x1xf32, #tpu.memory_space<vmem>>) attributes {dimension_semantics = [], scalar_prefetch = 0 : i64, scratch_operands = 0 : i64, tpu.core_type = #tpu.core_type<tc>} {
    %c0 = arith.constant 0 : index
    %c0_0 = arith.constant 0 : index
    %0 = vector.load %arg0[%c0, %c0_0] : memref<8x128xf32, #tpu.memory_space<vmem>>, vector<8x128xf32>
    %c0_1 = arith.constant 0 : index
    %c0_2 = arith.constant 0 : index
    %1 = vector.load %arg1[%c0_1, %c0_2] : memref<128x128xf32, #tpu.memory_space<vmem>>, vector<128x128xf32>
    %cst = arith.constant dense<0.000000e+00> : vector<8x128xf32>
    %2 = tpu.matmul %0, %1, %cst {dimension_numbers = #tpu.dot_dimension_numbers<[1], [0], [0], [1], [0, 0, 1, 1], [], []>} : vector<8x128xf32>, vector<128x128xf32>, vector<8x128xf32> -> vector<8x128xf32>
    %c0_3 = arith.constant 0 : index
    %c0_4 = arith.constant 0 : index
    %3 = vector.load %arg2[%c0_3, %c0_4] : memref<1x128xf32, #tpu.memory_space<vmem>>, vector<1x128xf32>
    %4 = vector.broadcast %3 : vector<1x128xf32> to vector<8x128xf32>
    %5 = arith.addf %2, %4 : vector<8x128xf32>
    %cst_5 = arith.constant 0.000000e+00 : f32
    %6 = vector.broadcast %cst_5 : f32 to vector<8x128xf32>
    %7 = arith.maximumf %5, %6 : vector<8x128xf32>
    %c0_6 = arith.constant 0 : index
    %c0_7 = arith.constant 0 : index
    %8 = memref.load %arg4[%c0_6, %c0_7] : memref<1x1xf32, #tpu.memory_space<smem>>
    %c0_8 = arith.constant 0 : index
    %c0_9 = arith.constant 0 : index
    %9 = vector.load %arg3[%c0_8, %c0_9] : memref<1x128xf32, #tpu.memory_space<vmem>>, vector<1x128xf32>
    %10 = vector.broadcast %9 : vector<1x128xf32> to vector<8x128xf32>
    %11 = arith.mulf %7, %10 : vector<8x128xf32>
    %cst_10 = arith.constant dense<0.000000e+00> : vector<8xf32>
    %12 = vector.multi_reduction <add>, %11, %cst_10 [1] : vector<8x128xf32> to vector<8xf32>
    %13 = vector.shape_cast %12 : vector<8xf32> to vector<8x1xf32>
    %14 = vector.broadcast %8 : f32 to vector<8x1xf32>
    %15 = arith.addf %13, %14 : vector<8x1xf32>
    %16 = vector.shape_cast %15 : vector<8x1xf32> to vector<8x1xf32>
    %17 = vector.broadcast %16 : vector<8x1xf32> to vector<8x128xf32>
    %c0_11 = arith.constant 0 : index
    %c0_12 = arith.constant 0 : index
    %18 = vector.load %arg6[%c0_11, %c0_12] : memref<8x128xf32, #tpu.memory_space<vmem>>, vector<8x128xf32>
    tpu.vector_store %arg6[%c0_11, %c0_12], %17 {strides = array<i32>} : memref<8x128xf32, #tpu.memory_space<vmem>>, vector<8x128xf32>,
    %19 = tpu.iota {dimensions = array<i32: 0>} : vector<8x1xi32>
    %c8_i32 = arith.constant 8 : i32
    %20 = vector.broadcast %c8_i32 : i32 to vector<8x1xi32>
    %21 = arith.cmpi slt, %19, %20 : vector<8x1xi32>
    %c0_13 = arith.constant 0 : index
    %c0_14 = arith.constant 0 : index
    %22 = vector.load %arg5[%c0_13, %c0_14] : memref<8x1xf32, #tpu.memory_space<vmem>>, vector<8x1xf32>
    %23 = arith.subf %15, %22 : vector<8x1xf32>
    %cst_15 = arith.constant 0.000000e+00 : f32
    %24 = vector.broadcast %cst_15 : f32 to vector<8x1xf32>
    %25 = arith.select %21, %23, %24 : vector<8x1xi1>, vector<8x1xf32>
    %26 = arith.mulf %25, %25 : vector<8x1xf32>
    %cst_16 = arith.constant dense<0.000000e+00> : vector<1xf32>
    %27 = vector.multi_reduction <add>, %26, %cst_16 [0] : vector<8x1xf32> to vector<1xf32>
    %28 = vector.shape_cast %27 : vector<1xf32> to vector<1x1xf32>
    %c0_17 = arith.constant 0 : index
    %c0_18 = arith.constant 0 : index
    %29 = vector.load %arg7[%c0_17, %c0_18] : memref<1x1xf32, #tpu.memory_space<vmem>>, vector<1x1xf32>
    tpu.vector_store %arg7[%c0_17, %c0_18], %28 {strides = array<i32>} : memref<1x1xf32, #tpu.memory_space<vmem>>, vector<1x1xf32>,
    return
  }
}

</mosaic_0001>

<llo_original>
// kernel: feed_forward_model.1
$region0: #{feed_forward_model.1}
  #allocation0 [shape = 'u32[]', space=smem, size = 0x4, offset = 0x4, fixed_abs, tag = 'smem constant byte address 0x4 - core index']
  #allocation1 [shape = 'u32[144,128]{1,0:T(1,128)}', space=vmem, size = 0x12000, scoped, tag = 'internal scratch']
  #allocation2 [shape = 'f32[1,1]{1,0:T(1,128)S(6)}', space=smem, size = 0x200, scoped, tag = 'scoped memory for feed_forward_model.1']
  %s0 = inlined_call_operand.vmem [shape: f32[8,128], index: 0, kind: input, shape index: {}]
  %s1 = inlined_call_operand.vmem [shape: f32[128,128], index: 1, kind: input, shape index: {}]
  %s2 = inlined_call_operand.vmem [shape: f32[1,128], index: 2, kind: input, shape index: {}]
  %s3 = inlined_call_operand.vmem [shape: f32[1,128], index: 3, kind: input, shape index: {}]
  %s4 = inlined_call_operand.<no memory space> [shape: f32[1,1], index: 4, kind: input, shape index: {}]
  %s5 = inlined_call_operand.vmem [shape: f32[8,1], index: 5, kind: input, shape index: {}]
  %s6 = inlined_call_operand.vmem [shape: f32[8,128], index: 6, kind: output, shape index: {0}]
  %s7 = inlined_call_operand.hbm [shape: f32[1,1], index: 7, kind: output, shape index: {1}]
  %8 = xla_tuple %s6, %s7
  %s9 = sld [smem:[#allocation0]]
  $region42: #{feed_forward_model.1} parent=0
    _
  %s11 = ssub.s32 1, %s9
  %s12 = scalar_select 0, %s11, %s9
  %13 = sst [smem:[#allocation2]] %s4
  $region1: #{feed_forward_model.1} parent=0
    #allocation3 [shape = 'u8[512]{0}', space=vmem, size = 0x400, scoped, tag = 'output window, operand 1, single buffered']
    #allocation4 [shape = 's32[1]{0}', space=sflag, size = 0x4, scoped, tag = 'scoped memory for feed_forward_model.1']
    %14 = vsyncpa [#allocation4], 0
    // Predicated region
    $region2: #{feed_forward_model.1} parent=1 // pred_check
      _
    $region3: #{feed_forward_model.1} parent=1 // pred_check_branch
      %16 = sbr.rel (0) target = $region5
    $region4: #{feed_forward_model.1} parent=1 // pred_region
      _
    $region5: #{feed_forward_model.1} parent=1 // pred_fallthru
      _
    // Predicated region
    $region6: #{feed_forward_model.1} parent=1 // pred_check
      _
    $region7: #{feed_forward_model.1} parent=1 // pred_check_branch
      %18 = sbr.rel (0) target = $region9
    $region8: #{feed_forward_model.1} parent=1 // pred_region
      _
    $region9: #{feed_forward_model.1} parent=1 // pred_fallthru
      _
    // Predicated region
    $region10: #{feed_forward_model.1} parent=1 // pred_check
      _
    $region11: #{feed_forward_model.1} parent=1 // pred_check_branch
      %20 = sbr.rel (0) target = $region13
    $region12: #{feed_forward_model.1} parent=1 // pred_region
      _
    $region13: #{feed_forward_model.1} parent=1 // pred_fallthru
      _
    // Predicated region
    $region14: #{feed_forward_model.1} parent=1 // pred_check
      _
    $region15: #{feed_forward_model.1} parent=1 // pred_check_branch
      %22 = sbr.rel (0) target = $region17
    $region16: #{feed_forward_model.1} parent=1 // pred_region
      _
    $region17: #{feed_forward_model.1} parent=1 // pred_fallthru
      _
    // Predicated region
    $region18: #{feed_forward_model.1} parent=1 // pred_check
      _
    $region19: #{feed_forward_model.1} parent=1 // pred_check_branch
      %24 = sbr.rel (0) target = $region21
    $region20: #{feed_forward_model.1} parent=1 // pred_region
      _
    $region21: #{feed_forward_model.1} parent=1 // pred_fallthru
      _
    // Predicated region
    $region22: #{feed_forward_model.1} parent=1 // pred_check
      _
    $region23: #{feed_forward_model.1} parent=1 // pred_check_branch
      %26 = sbr.rel (0) target = $region25
    $region24: #{feed_forward_model.1} parent=1 // pred_region
      _
    $region25: #{feed_forward_model.1} parent=1 // pred_fallthru
      _
    %v27 = vld [vmem:[%s0] sm:$0xff]
    %v28 = vld [vmem:[%s1] sm:$0xff]
    %v29 = vld [vmem:[%s1 + $0x8] sm:$0xff]
    %v30 = vld [vmem:[%s1 + $0x10] sm:$0xff]
    %v31 = vld [vmem:[%s1 + $0x18] sm:$0xff]
    %v32 = vld [vmem:[%s1 + $0x20] sm:$0xff]
    %v33 = vld [vmem:[%s1 + $0x28] sm:$0xff]
    %v34 = vld [vmem:[%s1 + $0x30] sm:$0xff]
    %v35 = vld [vmem:[%s1 + $0x38] sm:$0xff]
    %v36 = vld [vmem:[%s1 + $0x40] sm:$0xff]
    %v37 = vld [vmem:[%s1 + $0x48] sm:$0xff]
    %v38 = vld [vmem:[%s1 + $0x50] sm:$0xff]
    %v39 = vld [vmem:[%s1 + $0x58] sm:$0xff]
    %v40 = vld [vmem:[%s1 + $0x60] sm:$0xff]
    %v41 = vld [vmem:[%s1 + $0x68] sm:$0xff]
    %v42 = vld [vmem:[%s1 + $0x70] sm:$0xff]
    %v43 = vld [vmem:[%s1 + $0x78] sm:$0xff]
    %v44 = vld [vmem:[%s2] sm:$0x1]
    %v46 = vlaneseq
    %v47 = vshrl.u32 %v46, 7
    %v48 = vsub.s32 0, %v47
    %v49 = vrot.slane %v44, %v48
    %51 = vmatprep.subr.mxu0 0.0
    %52 = vmatpush1.msra.mxu0 %v43
    %53 = vmatprep.subr.mxu0 0.0
    %54 = vmatpush1.msra.mxu0 %v42
    %55 = vmatprep.subr.mxu0 0.0
    %56 = vmatpush1.msra.mxu0 %v41
    %57 = vmatprep.subr.mxu0 0.0
    %58 = vmatpush1.msra.mxu0 %v40
    %59 = vmatprep.subr.mxu0 0.0
    %60 = vmatpush1.msra.mxu0 %v39
    %61 = vmatprep.subr.mxu0 0.0
    %62 = vmatpush1.msra.mxu0 %v38
    %63 = vmatprep.subr.mxu0 0.0
    %64 = vmatpush1.msra.mxu0 %v37
    %65 = vmatprep.subr.mxu0 0.0
    %66 = vmatpush1.msra.mxu0 %v36
    %67 = vmatprep.subr.mxu0 0.0
    %68 = vmatpush1.msra.mxu0 %v35
    %69 = vmatprep.subr.mxu0 0.0
    %70 = vmatpush1.msra.mxu0 %v34
    %71 = vmatprep.subr.mxu0 0.0
    %72 = vmatpush1.msra.mxu0 %v33
    %73 = vmatprep.subr.mxu0 0.0
    %74 = vmatpush1.msra.mxu0 %v32
    %75 = vmatprep.subr.mxu0 0.0
    %76 = vmatpush1.msra.mxu0 %v31
    %77 = vmatprep.subr.mxu0 0.0
    %78 = vmatpush1.msra.mxu0 %v30
    %79 = vmatprep.subr.mxu0 0.0
    %80 = vmatpush1.msra.mxu0 %v29
    %81 = vmatprep.subr.mxu0 0.0
    %82 = vmatpush1.msra.mxu0 %v28
    %83 = vmatprep.subr.mxu0 0.0
    %84 = vmatpush2.msra.mxu0 0.0
    %85 = vmatprep.subr.mxu0 0.0
    %86 = vmatpush2.msra.mxu0 0.0
    %87 = vmatprep.subr.mxu0 0.0
    %88 = vmatpush2.msra.mxu0 0.0
    %89 = vmatprep.subr.mxu0 0.0
    %90 = vmatpush2.msra.mxu0 0.0
    %91 = vmatprep.subr.mxu0 0.0
    %92 = vmatpush2.msra.mxu0 0.0
    %93 = vmatprep.subr.mxu0 0.0
    %94 = vmatpush2.msra.mxu0 0.0
    %95 = vmatprep.subr.mxu0 0.0
    %96 = vmatpush2.msra.mxu0 0.0
    %97 = vmatprep.subr.mxu0 0.0
    %98 = vmatpush2.msra.mxu0 0.0
    %99 = vmatprep.subr.mxu0 0.0
    %100 = vmatpush2.msra.mxu0 0.0
    %101 = vmatprep.subr.mxu0 0.0
    %102 = vmatpush2.msra.mxu0 0.0
    %103 = vmatprep.subr.mxu0 0.0
    %104 = vmatpush2.msra.mxu0 0.0
    %105 = vmatprep.subr.mxu0 0.0
    %106 = vmatpush2.msra.mxu0 0.0
    %107 = vmatprep.subr.mxu0 0.0
    %108 = vmatpush2.msra.mxu0 0.0
    %109 = vmatprep.subr.mxu0 0.0
    %110 = vmatpush2.msra.mxu0 0.0
    %111 = vmatprep.subr.mxu0 0.0
    %112 = vmatpush2.msra.mxu0 0.0
    %113 = vmatprep.subr.mxu0 0.0
    %114 = vmatpush2.msra.mxu0 0.0
    %115 = vmatprep.mubr.f32.mxu0 0.0
    %116 = vmatmul.mubr.f32.gmra.mxu0 %v27
    %v117 = vpop.f32.mrf.mxu0
    %v118 = vadd.f32 %v49, %v117
    %v119 = vpop.f32.mrf.mxu0
    %120 = vdwg.mxu0
    %v121 = vmax.f32 %v118, 0.0
    %s122 = sld [smem:[#allocation2]]
    %v123 = vld [vmem:[%s3] sm:$0x1]
    %v125 = vlaneseq
    %v126 = vshrl.u32 %v125, 7
    %v127 = vsub.s32 0, %v126
    %v128 = vrot.slane %v123, %v127
    %v130 = vmul.f32 %v121, %v128
    %131 = vadd.xlane.f32.xlu0 %v130
    %v132 = vpop.xlane.xlu0 %131
    %v133 = vstv %s122
    %v134 = vadd.f32 %v132, %v133
    %135 = vst [vmem:[%s6] sm:$0xff] %v134
    %v136 = vlaneseq
    %v137 = vshrl.u32 %v136, 7
    %vm138 = vcmp.lt.s32.totalorder %v137, 8
    %v139 = vld [vmem:[%s5] sm:$0xff]
    %v140 = vsub.f32 %v134, %v139
    %v141 = vsel %vm138, %v140, 0.0
    %v142 = vmul.f32 %v141, %v141
    %vm143 = vcmask 7168
    %v144 = vsel %vm143, %v142, 0.0
    %v145 = vrot.slane %v144, 4
    %v146 = vadd.f32 %v144, %v145
    %v147 = vrot.slane %v146, 2
    %v148 = vadd.f32 %v146, %v147
    %v149 = vrot.slane %v148, 1
    %v150 = vadd.f32 %v148, %v149
    %vm151 = vcmask 0
    %152 = vst.msk [vmem:[#allocation3] sm:$0x1] %vm151, %v150
    // Predicated region
    $region26: #{feed_forward_model.1} parent=1 // pred_check
      _
    $region27: #{feed_forward_model.1} parent=1 // pred_check_branch
      %154 = sbr.rel (0) target = $region29
    $region28: #{feed_forward_model.1} parent=1 // pred_region
      _
    $region29: #{feed_forward_model.1} parent=1 // pred_fallthru
      _
    // Predicated region
    $region30: #{feed_forward_model.1} parent=1 // pred_check
      _
    $region31: #{feed_forward_model.1} parent=1 // pred_check_branch
      %156 = sbr.rel (0) target = $region33
    $region32: #{feed_forward_model.1} parent=1 // pred_region
      %s158 = ssub.s32 16, 16
      %159 = vsyncadd [#allocation4], %s158
      %s161 = sshll.u32 [#allocation3], 4
      %s162 = int_to_ptr.vmem [resolvable:$true] %s161
      %164 = dma.vmem_to_hbm [thread:$0]  %s162, 16, %s7, [#allocation4]
    $region33: #{feed_forward_model.1} parent=1 // pred_fallthru
      _
    // Predicated region
    $region34: #{feed_forward_model.1} parent=1 // pred_check
      _
    $region35: #{feed_forward_model.1} parent=1 // pred_check_branch
      %166 = sbr.rel (0) target = $region37
    $region36: #{feed_forward_model.1} parent=1 // pred_region
      _
    $region37: #{feed_forward_model.1} parent=1 // pred_fallthru
      _
    // Predicated region
    $region38: #{feed_forward_model.1} parent=1 // pred_check
      _
    $region39: #{feed_forward_model.1} parent=1 // pred_check_branch
      %168 = sbr.rel (0) target = $region41
    $region40: #{feed_forward_model.1} parent=1 // pred_region
      %169 = dma.done [#allocation4], 16
    $region41: #{feed_forward_model.1} parent=1 // pred_fallthru
      _
    %170 = vsyncpa [#allocation4], 1

</llo_original>
